<compile_context>
chip_gen: v5e
topology: v5e:2x2
jax: 0.10.0
libtpu: 0.0.40
codegen_flags: <defaults>
</compile_context>

<pallas_src>
import functools

import jax
import jax.numpy as jnp
from jax.experimental import pallas as pl
from jax.experimental.pallas import tpu as pltpu

_LANE = 128


def _round_up(n, m):
    return ((n + m - 1) // m) * m


# ----------------------------------------------------------------------------
# Kernel bodies
# ----------------------------------------------------------------------------
def _hidden(x_ref, w1_ref, b1_ref):
    """Linear(obs->latent) + ReLU.  jnp.dot -> MXU (the MXU slot is otherwise
    idle here; the tiny-K VPU unroll risked binding VALU instead)."""
    h = jnp.dot(x_ref[...], w1_ref[...], preferred_element_type=jnp.float32)
    return jnp.maximum(h + b1_ref[...], 0.0)


def _discrete_kernel(x_ref, w1_ref, b1_ref, w2_ref, b2_ref, probs_ref):
    # Linear -> ReLU -> Linear -> Softmax(dim=-1), fused in VMEM.
    # Output feature dim padded to 128 lanes; pad lanes have a -1e30 bias so
    # they never win the max and contribute exp(...) == 0 to the denominator.
    h = _hidden(x_ref, w1_ref, b1_ref)
    logits = jnp.dot(h, w2_ref[...], preferred_element_type=jnp.float32) + b2_ref[...]
    m = jnp.max(logits, axis=-1, keepdims=True)
    e = jnp.exp(logits - m)
    denom = jnp.sum(e, axis=-1, keepdims=True)
    # EUP approx reciprocal (free slot) + one Newton step -> f32-exact normalization.
    r = pl.reciprocal(denom, approx=True)
    r = r * (2.0 - denom * r)
    probs_ref[...] = e * r


def _continuous_kernel(x_ref, w1_ref, b1_ref, w2_ref, b2_ref, bd_ref, out_ref,
                       *, act_dim):
    # Linear -> ReLU -> Linear.  W2's A columns are duplicated into lanes
    # [0,A) (mean) and [A,2A) (std) of the 128-lane padded weight, so a single
    # matmul produces the latent twice; a lane mask selects tanh(.)*bound vs
    # softplus(.) and one unmasked [TB, 128] slab is stored (no concatenate).
    h = _hidden(x_ref, w1_ref, b1_ref)
    latent = jnp.dot(h, w2_ref[...], preferred_element_type=jnp.float32) + b2_ref[...]
    mean = jnp.tanh(latent) * bd_ref[...]
    # softplus(x) = max(x, 0) + log1p(exp(-|x|))   (numerically stable)
    std = jnp.maximum(latent, 0.0) + jnp.log1p(jnp.exp(-jnp.abs(latent)))
    lane = jax.lax.broadcasted_iota(jnp.int32, latent.shape, dimension=1)
    out_ref[...] = jnp.where(lane < act_dim, mean, std)


# ----------------------------------------------------------------------------
# Tiling / spec helpers
# ----------------------------------------------------------------------------
def _const_spec(arr):
    """Whole-array block, constant index_map -> VMEM-resident across the grid."""
    nd = arr.ndim
    return pl.BlockSpec(arr.shape, lambda i, _nd=nd: (0,) * _nd)


def _pick_tb(batch, *, budget_bytes=8 << 20, cap=4096):
    """Batch tile: multiple of 8, divides `batch` (already padded to 8), sized
    from a VMEM byte budget; keeps >= 2 grid steps when the batch allows so
    v7x's two TensorCores both get work (v5e/v6e: largest tile still wins)."""
    # ~ lane-padded f32 bytes per batch row per grid step:
    #   2x x-block (double-buffered) + 2x out-block + h + latent + margin.
    per_row = 4096
    tb = min(cap, budget_bytes // per_row, batch)
    tb -= tb % 8
    tb = max(tb, 8)
    if batch > 8 and tb >= batch:
        half = batch // 2
        tb = max(8, half - (half % 8))
    while batch % tb != 0:
        tb -= 8
    return tb


def _vmem_limit(tb, obs, n_pad):
    """Explicit scoped-VMEM limit sized from the tile estimate (v5e's 16 MiB
    scoped default is the first binding limit when tiles grow)."""
    lane_row = 4 * _LANE
    per_row = lane_row * (2 * pl.cdiv(obs, _LANE) + 2 * pl.cdiv(n_pad, _LANE) + 2)
    est = tb * per_row + (2 << 20)          # + weights / biases / misc headroom
    return int(min(max(2 * est, 4 << 20), 64 << 20))


def _pad_batch(x):
    """Zero-pad the batch to a multiple of 8 (no giant-single-block fallback)."""
    b = x.shape[0]
    bp = _round_up(b, 8)
    if bp != b:
        x = jnp.pad(x, ((0, bp - b), (0, 0)))
    return x, b, bp


# ----------------------------------------------------------------------------
# Wrappers
# ----------------------------------------------------------------------------
def policy_net_discrete(x, w1, b1, w2, b2):
    """Linear -> ReLU -> Linear -> Softmax.  Returns Categorical probs [B, A]."""
    x, B, Bp = _pad_batch(x.astype(jnp.float32))
    obs = x.shape[1]
    lat, A = w2.shape
    n_pad = max(_LANE, _round_up(A, _LANE))

    w1 = w1.astype(jnp.float32)
    b1 = jnp.asarray(b1, jnp.float32).reshape(1, lat)
    # Lane-dense output: zero-pad W2 columns; pad b2 lanes with -1e30 so the
    # padded logits vanish from the softmax.
    w2p = jnp.zeros((lat, n_pad), jnp.float32).at[:, :A].set(w2.astype(jnp.float32))
    b2p = jnp.full((1, n_pad), -1e30, jnp.float32).at[:, :A].set(
        jnp.asarray(b2, jnp.float32).reshape(1, A))

    tb = _pick_tb(Bp)
    probs = pl.pallas_call(
        _discrete_kernel,
        out_shape=jax.ShapeDtypeStruct((Bp, n_pad), jnp.float32),
        grid=(Bp // tb,),
        in_specs=[
            pl.BlockSpec((tb, obs), lambda i: (i, 0)),
            _const_spec(w1), _const_spec(b1), _const_spec(w2p), _const_spec(b2p),
        ],
        out_specs=pl.BlockSpec((tb, n_pad), lambda i: (i, 0)),
        compiler_params=pltpu.CompilerParams(
            dimension_semantics=("parallel",),
            vmem_limit_bytes=_vmem_limit(tb, obs, n_pad)),
        cost_estimate=pl.CostEstimate(
            flops=2 * Bp * (obs * lat + lat * n_pad),
            transcendentals=Bp * n_pad,
            bytes_accessed=4 * (Bp * obs + obs * lat + lat + lat * n_pad
                                + n_pad + Bp * n_pad)),
    )(x, w1, b1, w2p, b2p)
    return probs[:B, :A]


def policy_net_continuous(x, w1, b1, w2, b2, action_bd):
    """Linear -> ReLU -> Linear; mean = tanh(latent)*bound, std = softplus(latent)."""
    x, B, Bp = _pad_batch(x.astype(jnp.float32))
    obs = x.shape[1]
    lat, A = w2.shape
    n_pad = max(_LANE, _round_up(2 * A, _LANE))

    w1 = w1.astype(jnp.float32)
    b1 = jnp.asarray(b1, jnp.float32).reshape(1, lat)
    w2f = w2.astype(jnp.float32)
    b2f = jnp.asarray(b2, jnp.float32).reshape(1, A)
    bdf = jnp.asarray(action_bd, jnp.float32).reshape(1, A)
    # Duplicate W2/b2 columns into lanes [0,A) (mean) and [A,2A) (std);
    # lanes >= 2A are zero and never read back.
    w2p = jnp.zeros((lat, n_pad), jnp.float32).at[:, :A].set(w2f).at[:, A:2 * A].set(w2f)
    b2p = jnp.zeros((1, n_pad), jnp.float32).at[:, :A].set(b2f).at[:, A:2 * A].set(b2f)
    bdp = jnp.zeros((1, n_pad), jnp.float32).at[:, :A].set(bdf)

    tb = _pick_tb(Bp)
    slab = pl.pallas_call(
        functools.partial(_continuous_kernel, act_dim=A),
        out_shape=jax.ShapeDtypeStruct((Bp, n_pad), jnp.float32),
        grid=(Bp // tb,),
        in_specs=[
            pl.BlockSpec((tb, obs), lambda i: (i, 0)),
            _const_spec(w1), _const_spec(b1), _const_spec(w2p), _const_spec(b2p),
            _const_spec(bdp),
        ],
        out_specs=pl.BlockSpec((tb, n_pad), lambda i: (i, 0)),
        compiler_params=pltpu.CompilerParams(
            dimension_semantics=("parallel",),
            vmem_limit_bytes=_vmem_limit(tb, obs, n_pad)),
        cost_estimate=pl.CostEstimate(
            flops=2 * Bp * (obs * lat + lat * n_pad),
            transcendentals=2 * Bp * n_pad,
            bytes_accessed=4 * (Bp * obs + obs * lat + lat + lat * n_pad
                                + 2 * n_pad + Bp * n_pad)),
    )(x, w1, b1, w2p, b2p, bdp)
    return slab[:B, :A], slab[:B, A:2 * A]


# ----------------------------------------------------------------------------
# Reference (pure JAX) for sanity check
# ----------------------------------------------------------------------------
def _ref_discrete(x, w1, b1, w2, b2):
    h = jnp.maximum(x @ w1 + b1, 0.0)
    return jax.nn.softmax(h @ w2 + b2, axis=-1)


def _ref_continuous(x, w1, b1, w2, b2, bd):
    h = jnp.maximum(x @ w1 + b1, 0.0)
    latent = h @ w2 + b2
    return jnp.tanh(latent) * bd, jax.nn.softplus(latent)


if __name__ == "__main__":
    key = jax.random.PRNGKey(0)
    ks = jax.random.split(key, 10)

    # CartPole/Pendulum-like sizes: obs_dim=4, latent_dim=64,
    # discrete action_size=2, continuous action_dim=2.
    B, OBS, LAT = 16, 4, 64
    N_ACTIONS = 2      # discrete head
    ACT_DIM = 2        # continuous head
    ACT_BOUND = 2.0

    x = jax.random.normal(ks[0], (B, OBS), dtype=jnp.float32)

    # Deterministic "PyTorch-Linear-like" init (uniform in +-1/sqrt(fan_in)).
    def lin_init(kw, kb, fan_in, fan_out):
        bound = 1.0 / jnp.sqrt(fan_in)
        w = jax.random.uniform(kw, (fan_in, fan_out), jnp.float32, -bound, bound)
        b = jax.random.uniform(kb, (1, fan_out), jnp.float32, -bound, bound)
        return w, b

    # ---- discrete head ----
    w1d, b1d = lin_init(ks[1], ks[2], OBS, LAT)
    w2d, b2d = lin_init(ks[3], ks[4], LAT, N_ACTIONS)

    probs = policy_net_discrete(x, w1d, b1d, w2d, b2d)
    jax.block_until_ready(probs)
    probs_ref = _ref_discrete(x, w1d, b1d, w2d, b2d)
    assert probs.shape == (B, N_ACTIONS)
    assert jnp.allclose(probs, probs_ref, atol=1e-5), "discrete mismatch"
    assert jnp.allclose(jnp.sum(probs, axis=-1), 1.0, atol=1e-5), "probs not normalized"

    # Ragged batch (B % 8 != 0) exercises the host-side pad-and-slice path.
    probs_r = policy_net_discrete(x[:10], w1d, b1d, w2d, b2d)
    jax.block_until_ready(probs_r)
    assert probs_r.shape == (10, N_ACTIONS)
    assert jnp.allclose(probs_r, probs_ref[:10], atol=1e-5), "ragged-batch mismatch"

    # ---- continuous head ----
    w1c, b1c = lin_init(ks[5], ks[6], OBS, LAT)
    w2c, b2c = lin_init(ks[7], ks[8], LAT, ACT_DIM)
    bd = jnp.full((1, ACT_DIM), ACT_BOUND, dtype=jnp.float32)

    mean, std = policy_net_continuous(x, w1c, b1c, w2c, b2c, bd)
    jax.block_until_ready((mean, std))
    mean_ref, std_ref = _ref_continuous(x, w1c, b1c, w2c, b2c, bd)
    assert jnp.allclose(mean, mean_ref, atol=1e-5), "continuous mean mismatch"
    assert jnp.allclose(std, std_ref, atol=1e-5), "continuous std mismatch"

    # TODO(synk): th.distributions.Categorical / Normal objects are host-side
    # containers over these parameters; sampling/log_prob is out of kernel scope.
    print("KERNEL_OK")
</pallas_src>

<mosaic_0001>
module attributes {stable_mosaic.version = 11 : i64} {
  func.func @_discrete_kernel(%arg0: i32, %arg1: memref<8x4xf32, #tpu.memory_space<vmem>>, %arg2: memref<4x64xf32, #tpu.memory_space<vmem>>, %arg3: memref<1x64xf32, #tpu.memory_space<vmem>>, %arg4: memref<64x128xf32, #tpu.memory_space<vmem>>, %arg5: memref<1x128xf32, #tpu.memory_space<vmem>>, %arg6: memref<8x128xf32, #tpu.memory_space<vmem>>) attributes {dimension_semantics = [#tpu.dimension_semantics<parallel>], iteration_bounds = array<i64: 2>, scalar_prefetch = 0 : i64, scratch_operands = 0 : i64, tpu.core_type = #tpu.core_type<tc>, window_params = [{transform_indices = @transform_0, window_bounds = array<i64: 8, 4>}, {pipeline_mode = #tpu.pipeline_mode<synchronous>, transform_indices = @transform_1, window_bounds = array<i64: 4, 64>}, {pipeline_mode = #tpu.pipeline_mode<synchronous>, transform_indices = @transform_2, window_bounds = array<i64: 1, 64>}, {pipeline_mode = #tpu.pipeline_mode<synchronous>, transform_indices = @transform_3, window_bounds = array<i64: 64, 128>}, {pipeline_mode = #tpu.pipeline_mode<synchronous>, transform_indices = @transform_4, window_bounds = array<i64: 1, 128>}, {transform_indices = @transform_5, window_bounds = array<i64: 8, 128>}]} {
    %c0 = arith.constant 0 : index
    %c0_0 = arith.constant 0 : index
    %0 = vector.load %arg1[%c0, %c0_0] : memref<8x4xf32, #tpu.memory_space<vmem>>, vector<8x4xf32>
    %c0_1 = arith.constant 0 : index
    %c0_2 = arith.constant 0 : index
    %1 = vector.load %arg2[%c0_1, %c0_2] : memref<4x64xf32, #tpu.memory_space<vmem>>, vector<4x64xf32>
    %cst = arith.constant dense<0.000000e+00> : vector<8x64xf32>
    %2 = tpu.matmul %0, %1, %cst {dimension_numbers = #tpu.dot_dimension_numbers<[1], [0], [0], [1], [0, 0, 1, 1], [], []>} : vector<8x4xf32>, vector<4x64xf32>, vector<8x64xf32> -> vector<8x64xf32>
    %c0_3 = arith.constant 0 : index
    %c0_4 = arith.constant 0 : index
    %3 = vector.load %arg3[%c0_3, %c0_4] : memref<1x64xf32, #tpu.memory_space<vmem>>, vector<1x64xf32>
    %4 = vector.broadcast %3 : vector<1x64xf32> to vector<8x64xf32>
    %5 = arith.addf %2, %4 : vector<8x64xf32>
    %cst_5 = arith.constant 0.000000e+00 : f32
    %6 = vector.broadcast %cst_5 : f32 to vector<8x64xf32>
    %7 = arith.maximumf %5, %6 : vector<8x64xf32>
    %c0_6 = arith.constant 0 : index
    %c0_7 = arith.constant 0 : index
    %8 = vector.load %arg4[%c0_6, %c0_7] : memref<64x128xf32, #tpu.memory_space<vmem>>, vector<64x128xf32>
    %cst_8 = arith.constant dense<0.000000e+00> : vector<8x128xf32>
    %9 = tpu.matmul %7, %8, %cst_8 {dimension_numbers = #tpu.dot_dimension_numbers<[1], [0], [0], [1], [0, 0, 1, 1], [], []>} : vector<8x64xf32>, vector<64x128xf32>, vector<8x128xf32> -> vector<8x128xf32>
    %c0_9 = arith.constant 0 : index
    %c0_10 = arith.constant 0 : index
    %10 = vector.load %arg5[%c0_9, %c0_10] : memref<1x128xf32, #tpu.memory_space<vmem>>, vector<1x128xf32>
    %11 = vector.broadcast %10 : vector<1x128xf32> to vector<8x128xf32>
    %12 = arith.addf %9, %11 : vector<8x128xf32>
    %cst_11 = arith.constant dense<0xFF800000> : vector<8xf32>
    %13 = vector.multi_reduction <maximumf>, %12, %cst_11 [1] : vector<8x128xf32> to vector<8xf32>
    %14 = vector.shape_cast %13 : vector<8xf32> to vector<8x1xf32>
    %15 = vector.broadcast %14 : vector<8x1xf32> to vector<8x128xf32>
    %16 = arith.subf %12, %15 : vector<8x128xf32>
    %17 = math.exp %16 : vector<8x128xf32>
    %cst_12 = arith.constant dense<0.000000e+00> : vector<8xf32>
    %18 = vector.multi_reduction <add>, %17, %cst_12 [1] : vector<8x128xf32> to vector<8xf32>
    %19 = vector.shape_cast %18 : vector<8xf32> to vector<8x1xf32>
    %20 = tpu.reciprocal %19 {approx = true} : vector<8x1xf32> -> vector<8x1xf32>
    %21 = arith.mulf %19, %20 : vector<8x1xf32>
    %cst_13 = arith.constant 2.000000e+00 : f32
    %22 = vector.broadcast %cst_13 : f32 to vector<8x1xf32>
    %23 = arith.subf %22, %21 : vector<8x1xf32>
    %24 = arith.mulf %20, %23 : vector<8x1xf32>
    %25 = vector.broadcast %24 : vector<8x1xf32> to vector<8x128xf32>
    %26 = arith.mulf %17, %25 : vector<8x128xf32>
    %c0_14 = arith.constant 0 : index
    %c0_15 = arith.constant 0 : index
    %27 = vector.load %arg6[%c0_14, %c0_15] : memref<8x128xf32, #tpu.memory_space<vmem>>, vector<8x128xf32>
    tpu.vector_store %arg6[%c0_14, %c0_15], %26 {strides = array<i32>} : memref<8x128xf32, #tpu.memory_space<vmem>>, vector<8x128xf32>,
    return
  }
  func.func @transform_0(%arg0: i32) -> (i32, i32) {
    %c0_i32 = arith.constant 0 : i32
    %c0_i32_0 = arith.constant 0 : i32
    return %arg0, %c0_i32 : i32, i32
  }
  func.func @transform_1(%arg0: i32) -> (i32, i32) {
    %c0_i32 = arith.constant 0 : i32
    %c0_i32_0 = arith.constant 0 : i32
    %c0_i32_1 = arith.constant 0 : i32
    return %c0_i32, %c0_i32_0 : i32, i32
  }
  func.func @transform_2(%arg0: i32) -> (i32, i32) {
    %c0_i32 = arith.constant 0 : i32
    %c0_i32_0 = arith.constant 0 : i32
    %c0_i32_1 = arith.constant 0 : i32
    return %c0_i32, %c0_i32_0 : i32, i32
  }
  func.func @transform_3(%arg0: i32) -> (i32, i32) {
    %c0_i32 = arith.constant 0 : i32
    %c0_i32_0 = arith.constant 0 : i32
    %c0_i32_1 = arith.constant 0 : i32
    return %c0_i32, %c0_i32_0 : i32, i32
  }
  func.func @transform_4(%arg0: i32) -> (i32, i32) {
    %c0_i32 = arith.constant 0 : i32
    %c0_i32_0 = arith.constant 0 : i32
    %c0_i32_1 = arith.constant 0 : i32
    return %c0_i32, %c0_i32_0 : i32, i32
  }
  func.func @transform_5(%arg0: i32) -> (i32, i32) {
    %c0_i32 = arith.constant 0 : i32
    %c0_i32_0 = arith.constant 0 : i32
    return %arg0, %c0_i32 : i32, i32
  }
}

</mosaic_0001>

<llo_original>
// kernel: tpu_custom_call.1
$region0: #{tpu_custom_call.1}
  #allocation0 [shape = 'u32[]', space=smem, size = 0x4, offset = 0x4, fixed_abs, tag = 'smem constant byte address 0x4 - core index']
  #allocation1 [shape = 'u32[72,128]{1,0:T(1,128)}', space=vmem, size = 0x9000, scoped, tag = 'internal scratch']
  %s0 = inlined_call_operand.vmem [shape: f32[16,4], index: 0, kind: input, shape index: {}]
  %s1 = inlined_call_operand.vmem [shape: f32[4,64], index: 1, kind: input, shape index: {}]
  %s2 = inlined_call_operand.vmem [shape: f32[1,64], index: 2, kind: input, shape index: {}]
  %s3 = inlined_call_operand.hbm [shape: f32[64,128], index: 3, kind: input, shape index: {}]
  %s4 = inlined_call_operand.vmem [shape: f32[1,128], index: 4, kind: input, shape index: {}]
  %s5 = inlined_call_operand.hbm [shape: f32[16,128], index: 5, kind: output, shape index: {}]
  %s6 = sld [smem:[#allocation0]]
  $region57: #{tpu_custom_call.1} parent=0
    _
  %s8 = ssub.s32 1, %s6
  %s9 = scalar_select 0, %s8, %s6
  $region1: #{tpu_custom_call.1} parent=0
    #allocation2 [shape = 'u8[32768]{0}', space=vmem, size = 0x8000, scoped, tag = 'input window, operand 3, single buffered']
    #allocation3 [shape = 's32[2]{0}', space=sflag, size = 0x8, scoped, tag = 'scoped memory for tpu_custom_call.1']
    #allocation4 [shape = 's32[2]{0}', space=sflag, size = 0x8, scoped, tag = 'scoped memory for tpu_custom_call.1']
    #allocation5 [shape = 'u8[8192]{0}', space=vmem, size = 0x2000, scoped, tag = 'output window, operand 0']
    %10 = vsyncpa [#allocation3], 0
    %11 = vsyncpa [#allocation4], 0
    %s12 = scalar_lea.sflag [#allocation4], 1
    %13 = vsyncpa %s12, 0
    loop: start=0, step=1, limit=4
    $region2: #{tpu_custom_call.1} parent=1 // loop_pre_header
      _
    $region3: #{tpu_custom_call.1} parent=1 // loop_header
      %s15 = sphi 0, %s19
      %p16 = scmp.ge.s32.totalorder %s15, 4
      %s25 = sphi 0, %s27
      %s28 = sphi 0, %s25
      %s29 = sphi 0, %s28
      %s45 = sphi 0, %s29
      %s49 = sphi 0, %s49
      %s51 = sphi 0, %s49
      %s52 = sphi 0, %s51
      %s66 = sphi 0, %s52
      %s70 = sphi 0, %s70
      %s72 = sphi 0, %s70
      %s73 = sphi 0, %s72
      %s87 = sphi 0, %s73
      %s91 = sphi 0, %s91
      %s93 = sphi 0, %s91
      %s94 = sphi 0, %s93
      %s108 = sphi 0, %s94
      %s112 = sphi 0, %s112
      %s114 = sphi 0, %s112
      %s115 = sphi 0, %s114
      %s129 = sphi 0, %s115
      %s135 = sphi 0, %s137
      %s138 = sphi 0, %s135
      %s139 = sphi 0, %s138
      %s155 = sphi 0, %s139
    $region4: #{tpu_custom_call.1} parent=1 // loop_header_branch
      %18 = sbr.rel (%p16) target = $region8
    $region5: #{tpu_custom_call.1} parent=1 // loop_body
      %s20 = ssub.s32 %s15, 1
      %s21 = ssub.s32 %s15, 2
      %s22 = sadd.s32 %s15, 1
      %s23 = ssub.s32 %s15, %s22
      %p24 = scmp.eq.s32.totalorder %s23, 0
      %s26 = sadd.s32 %s25, 1
      %s27 = scalar_select %p24, %s25, %s26
      %p30 = pneg %p24
      %p31 = scmp.eq.s32.totalorder %s15, 1
      %p32 = por %p30, %p31
      %p33 = scmp.ne.s32.totalorder %s25, %s28
      %p34 = scmp.eq.s32.totalorder %s15, 0
      %p35 = por %p33, %p34
      %p36 = scmp.ne.s32.totalorder %s25, %s28
      %p37 = scmp.eq.s32.totalorder %s20, 1
      %p38 = por %p36, %p37
      %p39 = scmp.ne.s32.totalorder %s28, %s29
      %p40 = scmp.eq.s32.totalorder %s20, 0
      %p41 = por %p39, %p40
      %p42 = scmp.ne.s32.totalorder %s28, %s29
      %p43 = scmp.eq.s32.totalorder %s21, 1
      %p44 = por %p42, %p43
      %p46 = scmp.ne.s32.totalorder %s29, %s45
      %p47 = scmp.eq.s32.totalorder %s21, 0
      %p48 = por %p46, %p47
      %s50 = sadd.s32 %s49, 1
      %p53 = scmp.eq.s32.totalorder %s15, 1
      %p54 = scmp.ne.s32.totalorder %s49, %s51
      %p55 = scmp.eq.s32.totalorder %s15, 0
      %p56 = por %p54, %p55
      %p57 = scmp.ne.s32.totalorder %s49, %s51
      %p58 = scmp.eq.s32.totalorder %s20, 1
      %p59 = por %p57, %p58
      %p60 = scmp.ne.s32.totalorder %s51, %s52
      %p61 = scmp.eq.s32.totalorder %s20, 0
      %p62 = por %p60, %p61
      %p63 = scmp.ne.s32.totalorder %s51, %s52
      %p64 = scmp.eq.s32.totalorder %s21, 1
      %p65 = por %p63, %p64
      %p67 = scmp.ne.s32.totalorder %s52, %s66
      %p68 = scmp.eq.s32.totalorder %s21, 0
      %p69 = por %p67, %p68
      %s71 = sadd.s32 %s70, 1
      %p74 = scmp.eq.s32.totalorder %s15, 1
      %p75 = scmp.ne.s32.totalorder %s70, %s72
      %p76 = scmp.eq.s32.totalorder %s15, 0
      %p77 = por %p75, %p76
      %p78 = scmp.ne.s32.totalorder %s70, %s72
      %p79 = scmp.eq.s32.totalorder %s20, 1
      %p80 = por %p78, %p79
      %p81 = scmp.ne.s32.totalorder %s72, %s73
      %p82 = scmp.eq.s32.totalorder %s20, 0
      %p83 = por %p81, %p82
      %p84 = scmp.ne.s32.totalorder %s72, %s73
      %p85 = scmp.eq.s32.totalorder %s21, 1
      %p86 = por %p84, %p85
      %p88 = scmp.ne.s32.totalorder %s73, %s87
      %p89 = scmp.eq.s32.totalorder %s21, 0
      %p90 = por %p88, %p89
      %s92 = sadd.s32 %s91, 1
      %p95 = scmp.eq.s32.totalorder %s15, 1
      %p96 = scmp.ne.s32.totalorder %s91, %s93
      %p97 = scmp.eq.s32.totalorder %s15, 0
      %p98 = por %p96, %p97
      %p99 = scmp.ne.s32.totalorder %s91, %s93
      %p100 = scmp.eq.s32.totalorder %s20, 1
      %p101 = por %p99, %p100
      %p102 = scmp.ne.s32.totalorder %s93, %s94
      %p103 = scmp.eq.s32.totalorder %s20, 0
      %p104 = por %p102, %p103
      %p105 = scmp.ne.s32.totalorder %s93, %s94
      %p106 = scmp.eq.s32.totalorder %s21, 1
      %p107 = por %p105, %p106
      %p109 = scmp.ne.s32.totalorder %s94, %s108
      %p110 = scmp.eq.s32.totalorder %s21, 0
      %p111 = por %p109, %p110
      %s113 = sadd.s32 %s112, 1
      %p116 = scmp.eq.s32.totalorder %s15, 1
      %p117 = scmp.ne.s32.totalorder %s112, %s114
      %p118 = scmp.eq.s32.totalorder %s15, 0
      %p119 = por %p117, %p118
      %p120 = scmp.ne.s32.totalorder %s112, %s114
      %p121 = scmp.eq.s32.totalorder %s20, 1
      %p122 = por %p120, %p121
      %p123 = scmp.ne.s32.totalorder %s114, %s115
      %p124 = scmp.eq.s32.totalorder %s20, 0
      %p125 = por %p123, %p124
      %p126 = scmp.ne.s32.totalorder %s114, %s115
      %p127 = scmp.eq.s32.totalorder %s21, 1
      %p128 = por %p126, %p127
      %p130 = scmp.ne.s32.totalorder %s115, %s129
      %p131 = scmp.eq.s32.totalorder %s21, 0
      %p132 = por %p130, %p131
      %s133 = ssub.s32 %s15, %s22
      %p134 = scmp.eq.s32.totalorder %s133, 0
      %s136 = sadd.s32 %s135, 1
      %s137 = scalar_select %p134, %s135, %s136
      %p140 = pneg %p134
      %p141 = scmp.eq.s32.totalorder %s15, 1
      %p142 = por %p140, %p141
      %p143 = scmp.ne.s32.totalorder %s135, %s138
      %p144 = scmp.eq.s32.totalorder %s15, 0
      %p145 = por %p143, %p144
      %p146 = scmp.ne.s32.totalorder %s135, %s138
      %p147 = scmp.eq.s32.totalorder %s20, 1
      %p148 = por %p146, %p147
      %p149 = scmp.ne.s32.totalorder %s138, %s139
      %p150 = scmp.eq.s32.totalorder %s20, 0
      %p151 = por %p149, %p150
      %p152 = scmp.ne.s32.totalorder %s138, %s139
      %p153 = scmp.eq.s32.totalorder %s21, 1
      %p154 = por %p152, %p153
      %p156 = scmp.ne.s32.totalorder %s139, %s155
      %p157 = scmp.eq.s32.totalorder %s21, 0
      %p158 = por %p156, %p157
      %p159 = scmp.le.s32.totalorder 1, %s15
      %p160 = scmp.lt.s32.totalorder %s15, 3
      %p161 = pnand %p159, %p160
      %p162 = pneg %p161
      // Predicated region
      $region9: #{tpu_custom_call.1} parent=5 // pred_check
        _
      $region10: #{tpu_custom_call.1} parent=5 // pred_check_branch
        %164 = sbr.rel (%p161) target = $region12
      $region11: #{tpu_custom_call.1} parent=5 // pred_region
        %s165 = ssub.s32 %s15, 1
        // Predicated region
        $region13: #{tpu_custom_call.1} parent=11 // pred_check
          %p166 = pneg %p62
        $region14: #{tpu_custom_call.1} parent=11 // pred_check_branch
          %168 = sbr.rel (%p166) target = $region16
        $region15: #{tpu_custom_call.1} parent=11 // pred_region
          _
        $region16: #{tpu_custom_call.1} parent=11 // pred_fallthru
          _
        // Predicated region
        $region17: #{tpu_custom_call.1} parent=11 // pred_check
          %p169 = pneg %p83
        $region18: #{tpu_custom_call.1} parent=11 // pred_check_branch
          %171 = sbr.rel (%p169) target = $region20
        $region19: #{tpu_custom_call.1} parent=11 // pred_region
          _
        $region20: #{tpu_custom_call.1} parent=11 // pred_fallthru
          _
        // Predicated region
        $region21: #{tpu_custom_call.1} parent=11 // pred_check
          %p172 = pneg %p104
        $region22: #{tpu_custom_call.1} parent=11 // pred_check_branch
          %174 = sbr.rel (%p172) target = $region24
        $region23: #{tpu_custom_call.1} parent=11 // pred_region
          %176 = vsyncadd [#allocation3], 0
          %s177 = sshll.u32 %s3, 4
          %s178 = int_to_ptr.hbm [resolvable:$true] %s177
          %s179 = sshll.u32 [#allocation2], 4
          %s180 = int_to_ptr.vmem [resolvable:$true] %s179
          %185 = dma.hbm_to_vmem [thread:$0]  %s178, 1024, %s180, [#allocation3], 128, 128, 8
        $region24: #{tpu_custom_call.1} parent=11 // pred_fallthru
          _
        // Predicated region
        $region25: #{tpu_custom_call.1} parent=11 // pred_check
          %p186 = pneg %p125
        $region26: #{tpu_custom_call.1} parent=11 // pred_check_branch
          %188 = sbr.rel (%p186) target = $region28
        $region27: #{tpu_custom_call.1} parent=11 // pred_region
          _
        $region28: #{tpu_custom_call.1} parent=11 // pred_fallthru
          _
      $region12: #{tpu_custom_call.1} parent=5 // pred_fallthru
        _
      %p189 = scmp.lt.s32.totalorder %s15, 2
      // Predicated region
      $region29: #{tpu_custom_call.1} parent=5 // pred_check
        %p190 = pneg %p189
      $region30: #{tpu_custom_call.1} parent=5 // pred_check_branch
        %192 = sbr.rel (%p190) target = $region32
      $region31: #{tpu_custom_call.1} parent=5 // pred_region
        // Predicated region
        $region33: #{tpu_custom_call.1} parent=31 // pred_check
          %p193 = pneg %p35
        $region34: #{tpu_custom_call.1} parent=31 // pred_check_branch
          %195 = sbr.rel (%p193) target = $region36
        $region35: #{tpu_custom_call.1} parent=31 // pred_region
          %p196 = scmp.lt.s32.totalorder %s15, 1
          %s197 = scalar_select %p196, %s15, 1
          %s198 = smul.addr %s197, 8
          %s199 = scalar_lea.vmem %s0, %s198
        $region36: #{tpu_custom_call.1} parent=31 // pred_fallthru
          _
      $region32: #{tpu_custom_call.1} parent=5 // pred_fallthru
        _
      %p200 = scmp.le.s32.totalorder 1, %s15
      %p201 = scmp.lt.s32.totalorder %s15, 3
      %p202 = pnand %p200, %p201
      %p203 = pneg %p202
      // Predicated region
      $region37: #{tpu_custom_call.1} parent=5 // pred_check
        _
      $region38: #{tpu_custom_call.1} parent=5 // pred_check_branch
        %205 = sbr.rel (%p202) target = $region40
      $region39: #{tpu_custom_call.1} parent=5 // pred_region
        %s206 = ssub.s32 %s15, 1
        // Predicated region
        $region41: #{tpu_custom_call.1} parent=39 // pred_check
          %p207 = pneg %p104
        $region42: #{tpu_custom_call.1} parent=39 // pred_check_branch
          %209 = sbr.rel (%p207) target = $region44
        $region43: #{tpu_custom_call.1} parent=39 // pred_region
          %211 = dma.done [#allocation3], 1024
        $region44: #{tpu_custom_call.1} parent=39 // pred_fallthru
          _
        %p212 = scmp.lt.s32.totalorder %s20, 1
        %s213 = scalar_select %p212, %s20, 1
        %s214 = smul.addr %s213, 8
        %s215 = scalar_lea.vmem %s0, %s214
        %p216 = pneg %p41
        %p217 = pneg %p38
        %p218 = pneg %p62
        %p219 = pneg %p59
        %p220 = pneg %p83
        %p221 = pneg %p80
        %p222 = pneg %p104
        %p223 = pneg %p101
        %p224 = pneg %p125
        %p225 = pneg %p122
        %p226 = pneg %p151
        %p227 = pneg %p148
        %s228 = sand.u32 %s138, 1
        %s229 = scalar_lea.sflag [#allocation4], %s228
        %s230 = sand.u32 %s138, 1
        %s231 = smul.addr %s230, 8
        %s232 = scalar_lea.vmem [#allocation5], %s231
        %p233 = scmp.lt.s32.totalorder %s20, 1
        %s234 = scalar_select %p233, %s20, 1
        %s235 = smul.addr %s234, 8
        %s236 = scalar_lea.vmem %s0, %s235
        %v237 = vld [vmem:[%s236] sm:$0xff]
        %v238 = vld [vmem:[%s1] sm:$0xf]
        %v239 = vld [vmem:[%s2] sm:$0x1]
        %v241 = vperm.slane %v239, 0
        %vm243 = vcmask 31744
        %v245 = vsel %vm243, %v237, 0
        %vm247 = vcmask 1043456
        %v249 = vsel %vm247, %v238, 0
        %251 = vmatpush.msra.mxu0 0.0
        %252 = vmatpush.msra.mxu0 0.0
        %253 = vmatpush.msra.mxu0 0.0
        %254 = vmatpush.msra.mxu0 0.0
        %255 = vmatpush.msra.mxu0 0.0
        %256 = vmatpush.msra.mxu0 0.0
        %257 = vmatpush.msra.mxu0 0.0
        %258 = vmatpush.msra.mxu0 0.0
        %259 = vmatpush.msra.mxu0 0.0
        %260 = vmatpush.msra.mxu0 0.0
        %261 = vmatpush.msra.mxu0 0.0
        %262 = vmatpush.msra.mxu0 0.0
        %263 = vmatpush.msra.mxu0 0.0
        %264 = vmatpush.msra.mxu0 0.0
        %265 = vmatpush.msra.mxu0 0.0
        %266 = vmatpush.msra.mxu0 %v249
        %267 = vmatmul.f32.gmra.mxu0 %v245
        %v268 = vpop.f32.mrf.mxu0
        %v269 = vadd.f32 %v241, %v268
        %270 = vdwg.mxu0
        %v271 = vmax.f32 %v269, 0.0
        %v272 = vld [vmem:[#allocation2] sm:$0xff]
        %v273 = vld [vmem:[#allocation2 + $0x8] sm:$0xff]
        %v274 = vld [vmem:[#allocation2 + $0x10] sm:$0xff]
        %v275 = vld [vmem:[#allocation2 + $0x18] sm:$0xff]
        %v276 = vld [vmem:[#allocation2 + $0x20] sm:$0xff]
        %v277 = vld [vmem:[#allocation2 + $0x28] sm:$0xff]
        %v278 = vld [vmem:[#allocation2 + $0x30] sm:$0xff]
        %v279 = vld [vmem:[#allocation2 + $0x38] sm:$0xff]
        %v280 = vld [vmem:[%s4] sm:$0x1]
        %v282 = vperm.slane %v280, 0
        %vm284 = vcmask 523264
        %v286 = vsel %vm284, %v271, 0
        %288 = vmatpush.msra.mxu0 0.0
        %289 = vmatpush.msra.mxu0 0.0
        %290 = vmatpush.msra.mxu0 0.0
        %291 = vmatpush.msra.mxu0 0.0
        %292 = vmatpush.msra.mxu0 0.0
        %293 = vmatpush.msra.mxu0 0.0
        %294 = vmatpush.msra.mxu0 0.0
        %295 = vmatpush.msra.mxu0 0.0
        %296 = vmatpush.msra.mxu0 %v279
        %297 = vmatpush.msra.mxu0 %v278
        %298 = vmatpush.msra.mxu0 %v277
        %299 = vmatpush.msra.mxu0 %v276
        %300 = vmatpush.msra.mxu0 %v275
        %301 = vmatpush.msra.mxu0 %v274
        %302 = vmatpush.msra.mxu0 %v273
        %303 = vmatpush.msra.mxu0 %v272
        %304 = vmatmul.f32.gmra.mxu0 %v286
        %v305 = vpop.f32.mrf.mxu0
        %v306 = vadd.f32 %v282, %v305
        %307 = vdwg.mxu0
        %308 = vmax.xlane.f32.xlu0 %v306
        %v309 = vpop.xlane.xlu0 %308
        %v310 = vsub.f32 %v306, %v309
        %v311 = vmul.f32 %v310, 1.442695
        %v312 = vpow.pop %v311
        %313 = vadd.xlane.f32.xlu0 %v312
        %v314 = vpop.xlane.xlu0 %313
        %v315 = vrcp.pop %v314
        %v316 = vmul.f32 %v314, %v315
        %v317 = vsub.f32 2.0, %v316
        %v318 = vmul.f32 %v315, %v317
        %v319 = vmul.f32 %v312, %v318
        %320 = vst [vmem:[%s232] sm:$0xff] %v319
        %s321 = sand.u32 %s138, 1
        %s322 = scalar_lea.sflag [#allocation4], %s321
        %s323 = sand.u32 %s138, 1
        %s324 = smul.addr %s323, 8
        %s325 = scalar_lea.vmem [#allocation5], %s324
        // Predicated region
        $region45: #{tpu_custom_call.1} parent=39 // pred_check
          %p326 = pneg %p148
        $region46: #{tpu_custom_call.1} parent=39 // pred_check_branch
          %328 = sbr.rel (%p326) target = $region48
        $region47: #{tpu_custom_call.1} parent=39 // pred_region
          %330 = vsyncadd %s322, 0
          %s331 = smul.addr %s20, 8
          %s332 = scalar_lea.hbm %s5, %s331
          %s334 = sshll.u32 %s325, 4
          %s335 = int_to_ptr.vmem [resolvable:$true] %s334
          %s336 = sshll.u32 %s332, 4
          %s337 = int_to_ptr.hbm [resolvable:$true] %s336
          %339 = dma.vmem_to_hbm [thread:$0]  %s335, 128, %s337, %s322
        $region48: #{tpu_custom_call.1} parent=39 // pred_fallthru
          _
      $region40: #{tpu_custom_call.1} parent=5 // pred_fallthru
        _
      %p340 = scmp.le.s32.totalorder 2, %s15
      // Predicated region
      $region49: #{tpu_custom_call.1} parent=5 // pred_check
        %p341 = pneg %p340
      $region50: #{tpu_custom_call.1} parent=5 // pred_check_branch
        %343 = sbr.rel (%p341) target = $region52
      $region51: #{tpu_custom_call.1} parent=5 // pred_region
        %s344 = ssub.s32 %s15, 2
        // Predicated region
        $region53: #{tpu_custom_call.1} parent=51 // pred_check
          %p345 = pneg %p154
        $region54: #{tpu_custom_call.1} parent=51 // pred_check_branch
          %347 = sbr.rel (%p345) target = $region56
        $region55: #{tpu_custom_call.1} parent=51 // pred_region
          %s348 = sand.u32 %s139, 1
          %s349 = scalar_lea.sflag [#allocation4], %s348
          %s350 = sand.u32 %s139, 1
          %s351 = smul.addr %s350, 8
          %s352 = scalar_lea.vmem [#allocation5], %s351
          %354 = dma.done %s349, 128
        $region56: #{tpu_custom_call.1} parent=51 // pred_fallthru
          _
      $region52: #{tpu_custom_call.1} parent=5 // pred_fallthru
        _
    $region6: #{tpu_custom_call.1} parent=1 // loop_footer
      %s19 = sadd.s32 1, %s15
    $region7: #{tpu_custom_call.1} parent=1 // loop_footer_branch
      %14 = sbr.rel target = $region3
    $region8: #{tpu_custom_call.1} parent=1 // loop_exit
      _
    %355 = vsyncpa [#allocation3], 1
    %s356 = scalar_lea.sflag [#allocation3], 1
    %357 = vsyncpa %s356, 1
    %358 = vsyncpa [#allocation4], 1
    %s359 = scalar_lea.sflag [#allocation4], 1
    %360 = vsyncpa %s359, 1

</llo_original>
